<compile_context>
chip_gen: v7x
topology: tpu7x:2x2x1
jax: 0.10.0
libtpu: 0.0.40
codegen_flags: <defaults>
</compile_context>

<pallas_src>
import functools
import itertools
import math

import jax
import jax.numpy as jnp
from jax.experimental import pallas as pl
from jax.experimental.pallas import tpu as pltpu


def _round_up(x, m):
    return -(-x // m) * m


def _vmem_capacity_bytes():
    """Per-TensorCore VMEM capacity (v5e/v6e: 128 MiB, v7x: 64 MiB)."""
    try:
        return int(pltpu.get_tpu_info().vmem_capacity_bytes)
    except Exception:
        return 64 * 1024 * 1024  # conservative fallback (v7x per-TC size)


def _sisnr_kernel(pr_ref, t_ref, out_ref, acc_pt_ref, acc_pp_ref, acc_tt_ref,
                  *, perms, eps, t_total):
    """Accumulate Gram sums over the T grid axis; at the last T step evaluate
    every permutation's mean-over-sources SI-SNR from the scalar table.

    pr_ref, t_ref : (S, b_tile, t_tile) VMEM tiles (source-major layout)
    out_ref       : (b_tile, P), P = S! permutations
    acc_pt_ref    : (S*S, b_tile, 1)  <pr_i, t_j> accumulators
    acc_pp_ref    : (S,   b_tile, 1)  <pr_i, pr_i> accumulators
    acc_tt_ref    : (S,   b_tile, 1)  <t_j, t_j> accumulators
    """
    S, b_tile, t_tile = pr_ref.shape
    k = pl.program_id(1)
    nk = pl.num_programs(1)

    @pl.when(k == 0)
    def _():
        acc_pt_ref[...] = jnp.zeros_like(acc_pt_ref)
        acc_pp_ref[...] = jnp.zeros_like(acc_pp_ref)
        acc_tt_ref[...] = jnp.zeros_like(acc_tt_ref)

    # Static: is there a ragged time tail to mask?  (Boundary-block reads are
    # unspecified, so zero out the product lanes past the true length.)
    rem = t_total % t_tile
    if rem:
        limit = jnp.where(k == nk - 1, rem, t_tile)
        lane = jax.lax.broadcasted_iota(jnp.int32, (b_tile, t_tile), 1)
        valid = lane < limit

    pr_rows = [pr_ref[i].astype(jnp.float32) for i in range(S)]
    t_rows = [t_ref[j].astype(jnp.float32) for j in range(S)]

    def dot(a, b):
        prod = a * b
        if rem:
            prod = jnp.where(valid, prod, 0.0)  # NaN-safe tail mask
        return jnp.sum(prod, axis=-1, keepdims=True)  # (b_tile, 1)

    for i in range(S):
        acc_pp_ref[i] += dot(pr_rows[i], pr_rows[i])
    for j in range(S):
        acc_tt_ref[j] += dot(t_rows[j], t_rows[j])
    for i in range(S):
        for j in range(S):
            acc_pt_ref[i * S + j] += dot(pr_rows[i], t_rows[j])

    @pl.when(k == nk - 1)
    def _():
        pp = [acc_pp_ref[i] for i in range(S)]            # (b_tile, 1)
        tt = [acc_tt_ref[j] for j in range(S)]
        inv_tt = [1.0 / (tt[j] + eps) for j in range(S)]  # exact, off hot path
        db_scale = 10.0 / math.log(10.0)

        tbl = {}
        for i in range(S):
            for j in range(S):
                pt = acc_pt_ref[i * S + j]
                alpha = pt * inv_tt[j]
                num = alpha * alpha * tt[j]
                # TODO(synk): Gram-form residual (pp - 2*alpha*pt + num) loses
                # precision for near-perfect reconstructions (>~60 dB); an
                # explicit two-pass e_t = pr - alpha*t path would fix that at
                # the cost of reading the inputs twice.
                den = jnp.maximum(pp[i] - 2.0 * alpha * pt + num, 0.0)
                tbl[(i, j)] = db_scale * jnp.log(num / (den + eps))

        inv_s = 1.0 / S
        cols = [sum(tbl[(perm[j], j)] for j in range(S)) * inv_s
                for perm in perms]                        # each (b_tile, 1)
        out_ref[...] = jnp.concatenate(cols, axis=-1)     # (b_tile, P)


def _all_perm_mean_sisnrs(pr_sm, t_sm, perms, eps, *, max_t_tile=None):
    """pr_sm, t_sm: (S, B, T) source-major.  Returns (B, P): mean-over-sources
    SI-SNR for every permutation."""
    S, B, T = pr_sm.shape
    P = len(perms)

    # ---- batch tiling: >= 2 batch blocks whenever possible so both v7x
    # TensorCores get work on the "parallel" axis --------------------------
    if B <= 8:
        b_tile = B                       # == full dim -> legal second-minor
    else:
        b_tile = min(32, _round_up(-(-B // 2), 8))
    grid_b = -(-B // b_tile)
    b_sub = _round_up(b_tile, 8)         # sublanes actually resident in VMEM

    # ---- VMEM budget: generation-aware, sublane-padding aware -------------
    vmem_cap = _vmem_capacity_bytes()
    vmem_limit = min(vmem_cap * 3 // 4, 100 * 1024 * 1024)
    fixed = 4 * 1024 * 1024              # accumulators, out block, slack
    # Half of the remaining budget goes to the 2x-double-buffered input
    # blocks; the other half covers Mosaic's elementwise temporaries (each
    # product materializes a (b_tile, t_tile) f32 intermediate before the
    # lane reduce).
    input_budget = max(1 << 20, (vmem_limit - fixed) // 2)
    bytes_per_t = 2 * 2 * S * b_sub * 4  # 2 arrays x 2 buffers, f32-sized

    t_align = 512 if T >= 512 else 128   # keep DMA row segments >= 2 KiB
    max_t = max(t_align, (input_budget // bytes_per_t) // t_align * t_align)
    if max_t_tile is not None:
        max_t = min(max_t, max_t_tile)
    if T <= max_t:
        t_tile = T                       # full-dim block: no tail masking
    else:
        t_tile = max(128, (max_t // 128) * 128)
    grid_k = -(-T // t_tile)

    kernel = functools.partial(_sisnr_kernel, perms=tuple(perms), eps=eps,
                               t_total=T)

    out = pl.pallas_call(
        kernel,
        out_shape=jax.ShapeDtypeStruct((grid_b * b_tile, P), jnp.float32),
        grid_spec=pltpu.PrefetchScalarGridSpec(
            num_scalar_prefetch=0,
            grid=(grid_b, grid_k),
            in_specs=[
                pl.BlockSpec((S, b_tile, t_tile), lambda b, k: (0, b, k)),
                pl.BlockSpec((S, b_tile, t_tile), lambda b, k: (0, b, k)),
            ],
            out_specs=pl.BlockSpec((b_tile, P), lambda b, k: (b, 0)),
            scratch_shapes=[
                pltpu.VMEM((S * S, b_tile, 1), jnp.float32),
                pltpu.VMEM((S, b_tile, 1), jnp.float32),
                pltpu.VMEM((S, b_tile, 1), jnp.float32),
            ],
        ),
        compiler_params=pltpu.CompilerParams(
            dimension_semantics=("parallel", "arbitrary"),
            vmem_limit_bytes=int(vmem_limit),
        ),
    )(pr_sm, t_sm)
    return out[:B]


def perm_invariant_sisdr_loss(pr_batch, t_batch, *, zero_mean=False, eps=1e-9,
                              stream_dtype=None, _max_t_tile=None):
    """Forward pass of PermInvariantSISDR with backward_loss=True,
    improvement=False, return_individual_results=False.

    Returns the scalar loss: -mean(best-permutation SI-SDR).
    """
    # normalize_input: truncate to common length (+ optional zero-mean)
    min_len = min(pr_batch.shape[-1], t_batch.shape[-1])
    pr = pr_batch[:, :, :min_len]
    t = t_batch[:, :, :min_len]
    if zero_mean:
        pr = pr - jnp.mean(pr, axis=-1, keepdims=True)
        t = t - jnp.mean(t, axis=-1, keepdims=True)

    dtype = jnp.float32 if stream_dtype is None else stream_dtype
    # Source-major (S, B, T) layout so the kernel blocks have clean
    # (batch_tile, time_tile) last-two dims (no 3->8 sublane padding).
    # TODO(synk): on v5e (0.82 TB/s HBM, DMA-bound) skip this transpose and
    # stream the (b_tile, S, t_tile) layout (optionally as bf16 via
    # stream_dtype); single code path here is tuned for v6e/v7x.
    pr_sm = jnp.transpose(pr.astype(dtype), (1, 0, 2))
    t_sm = jnp.transpose(t.astype(dtype), (1, 0, 2))

    S = pr_sm.shape[0]
    perms = list(itertools.permutations(range(S)))

    # (B, P) per-permutation mean-over-sources SI-SNR — Pallas kernel.
    mean_sisnrs = _all_perm_mean_sisnrs(pr_sm, t_sm, perms, eps,
                                        max_t_tile=_max_t_tile)

    # Best permutation = max of the per-permutation means.
    best = jnp.max(mean_sisnrs, axis=-1)                       # (B,)

    # TODO(synk): improvement=True (SISDRi with initial_mixtures) and
    # return_individual_results=True paths are not wired up here.
    return -jnp.mean(best)                                     # backward_loss


def _reference_loss(pr_batch, t_batch, eps=1e-9):
    """Pure-JAX reference mirroring the PyTorch module (default config)."""
    B, S, _ = pr_batch.shape
    perms = list(itertools.permutations(range(S)))

    def dot(x, y):
        return jnp.sum(x * y, axis=-1, keepdims=True)

    t_t_diag = dot(t_batch, t_batch)
    cols = []
    for perm in perms:
        pr_p = pr_batch[:, list(perm), :]
        s_t = dot(pr_p, t_batch) / (t_t_diag + eps) * t_batch
        e_t = pr_p - s_t
        cols.append(10.0 * jnp.log10(dot(s_t, s_t) / (dot(e_t, e_t) + eps)))
    all_sisnrs = jnp.concatenate(cols, axis=-1)
    best = jnp.argmax(jnp.mean(all_sisnrs, axis=-2), axis=-1)
    idx = jnp.broadcast_to(best[:, None, None], (B, S, 1))
    best_sisdr = jnp.take_along_axis(all_sisnrs, idx, axis=-1)
    return -jnp.mean(best_sisdr)


if __name__ == "__main__":
    key = jax.random.PRNGKey(0)
    B, S, T = 2, 3, 256  # batch_size=2, n_sources=3, wav length=256
    k1, k2, k3, k4 = jax.random.split(key, 4)
    pr_batch = jax.random.normal(k1, (B, S, T), dtype=jnp.float32)
    t_batch = jax.random.normal(k2, (B, S, T), dtype=jnp.float32)

    ref = jax.block_until_ready(_reference_loss(pr_batch, t_batch))

    # Single-step grid (b_tile = B, t_tile = T).
    loss = jax.block_until_ready(perm_invariant_sisdr_loss(pr_batch, t_batch))
    assert jnp.allclose(loss, ref, rtol=1e-3, atol=1e-3), (loss, ref)

    # Streamed-T accumulator path (grid_k = 2 with t_tile = 128, no tail).
    loss_tiled = jax.block_until_ready(
        perm_invariant_sisdr_loss(pr_batch, t_batch, _max_t_tile=128))
    assert jnp.allclose(loss_tiled, ref, rtol=1e-3, atol=1e-3), (loss_tiled, ref)

    # Ragged path: B not a multiple of b_tile (>=2 batch blocks for megacore)
    # and a masked time tail (T % t_tile != 0).
    B2, T2 = 10, 200
    pr2 = jax.random.normal(k3, (B2, S, T2), dtype=jnp.float32)
    t2 = jax.random.normal(k4, (B2, S, T2), dtype=jnp.float32)
    ref2 = jax.block_until_ready(_reference_loss(pr2, t2))
    loss2 = jax.block_until_ready(
        perm_invariant_sisdr_loss(pr2, t2, _max_t_tile=128))
    assert jnp.allclose(loss2, ref2, rtol=1e-3, atol=1e-3), (loss2, ref2)

    print("KERNEL_OK")
</pallas_src>

<mosaic_0001>
module attributes {stable_mosaic.version = 11 : i64} {
  func.func @_sisnr_kernel(%arg0: i32, %arg1: i32, %arg2: memref<3x2x256xf32, #tpu.memory_space<vmem>>, %arg3: memref<3x2x256xf32, #tpu.memory_space<vmem>>, %arg4: memref<2x6xf32, #tpu.memory_space<vmem>>, %arg5: memref<9x2x1xf32, #tpu.memory_space<vmem>>, %arg6: memref<3x2x1xf32, #tpu.memory_space<vmem>>, %arg7: memref<3x2x1xf32, #tpu.memory_space<vmem>>) attributes {dimension_semantics = [#tpu.dimension_semantics<parallel>, #tpu.dimension_semantics<arbitrary>], iteration_bounds = array<i64: 1, 1>, scalar_prefetch = 0 : i64, scratch_operands = 3 : i64, tpu.core_type = #tpu.core_type<tc>, window_params = [{transform_indices = @transform_0, window_bounds = array<i64: 3, 2, 256>}, {transform_indices = @transform_1, window_bounds = array<i64: 3, 2, 256>}, {transform_indices = @transform_2, window_bounds = array<i64: 2, 6>}]} {
    %c0_i32 = arith.constant 0 : i32
    %0 = arith.cmpi eq, %arg1, %c0_i32 : i32
    %1 = arith.extui %0 : i1 to i32
    %c0_i32_0 = arith.constant 0 : i32
    %2 = arith.cmpi ne, %1, %c0_i32_0 : i32
    scf.if %2 {
      %cst_116 = arith.constant 0.000000e+00 : f32
      %153 = vector.broadcast %cst_116 : f32 to vector<9x2x1xf32>
      %c0_117 = arith.constant 0 : index
      %c0_118 = arith.constant 0 : index
      %c0_119 = arith.constant 0 : index
      %154 = vector.load %arg5[%c0_117, %c0_118, %c0_119] : memref<9x2x1xf32, #tpu.memory_space<vmem>>, vector<9x2x1xf32>
      tpu.vector_store %arg5[%c0_117, %c0_118, %c0_119], %153 {strides = array<i32>} : memref<9x2x1xf32, #tpu.memory_space<vmem>>, vector<9x2x1xf32>,
      %cst_120 = arith.constant 0.000000e+00 : f32
      %155 = vector.broadcast %cst_120 : f32 to vector<3x2x1xf32>
      %c0_121 = arith.constant 0 : index
      %c0_122 = arith.constant 0 : index
      %c0_123 = arith.constant 0 : index
      %156 = vector.load %arg6[%c0_121, %c0_122, %c0_123] : memref<3x2x1xf32, #tpu.memory_space<vmem>>, vector<3x2x1xf32>
      tpu.vector_store %arg6[%c0_121, %c0_122, %c0_123], %155 {strides = array<i32>} : memref<3x2x1xf32, #tpu.memory_space<vmem>>, vector<3x2x1xf32>,
      %cst_124 = arith.constant 0.000000e+00 : f32
      %157 = vector.broadcast %cst_124 : f32 to vector<3x2x1xf32>
      %c0_125 = arith.constant 0 : index
      %c0_126 = arith.constant 0 : index
      %c0_127 = arith.constant 0 : index
      %158 = vector.load %arg7[%c0_125, %c0_126, %c0_127] : memref<3x2x1xf32, #tpu.memory_space<vmem>>, vector<3x2x1xf32>
      tpu.vector_store %arg7[%c0_125, %c0_126, %c0_127], %157 {strides = array<i32>} : memref<3x2x1xf32, #tpu.memory_space<vmem>>, vector<3x2x1xf32>,
    } else {
    }
    %c0 = arith.constant 0 : index
    %c0_1 = arith.constant 0 : index
    %c0_2 = arith.constant 0 : index
    %3 = vector.load %arg2[%c0, %c0_1, %c0_2] : memref<3x2x256xf32, #tpu.memory_space<vmem>>, vector<1x2x256xf32>
    %4 = vector.shape_cast %3 : vector<1x2x256xf32> to vector<2x256xf32>
    %c1 = arith.constant 1 : index
    %c0_3 = arith.constant 0 : index
    %c0_4 = arith.constant 0 : index
    %5 = vector.load %arg2[%c1, %c0_3, %c0_4] : memref<3x2x256xf32, #tpu.memory_space<vmem>>, vector<1x2x256xf32>
    %6 = vector.shape_cast %5 : vector<1x2x256xf32> to vector<2x256xf32>
    %c2 = arith.constant 2 : index
    %c0_5 = arith.constant 0 : index
    %c0_6 = arith.constant 0 : index
    %7 = vector.load %arg2[%c2, %c0_5, %c0_6] : memref<3x2x256xf32, #tpu.memory_space<vmem>>, vector<1x2x256xf32>
    %8 = vector.shape_cast %7 : vector<1x2x256xf32> to vector<2x256xf32>
    %c0_7 = arith.constant 0 : index
    %c0_8 = arith.constant 0 : index
    %c0_9 = arith.constant 0 : index
    %9 = vector.load %arg3[%c0_7, %c0_8, %c0_9] : memref<3x2x256xf32, #tpu.memory_space<vmem>>, vector<1x2x256xf32>
    %10 = vector.shape_cast %9 : vector<1x2x256xf32> to vector<2x256xf32>
    %c1_10 = arith.constant 1 : index
    %c0_11 = arith.constant 0 : index
    %c0_12 = arith.constant 0 : index
    %11 = vector.load %arg3[%c1_10, %c0_11, %c0_12] : memref<3x2x256xf32, #tpu.memory_space<vmem>>, vector<1x2x256xf32>
    %12 = vector.shape_cast %11 : vector<1x2x256xf32> to vector<2x256xf32>
    %c2_13 = arith.constant 2 : index
    %c0_14 = arith.constant 0 : index
    %c0_15 = arith.constant 0 : index
    %13 = vector.load %arg3[%c2_13, %c0_14, %c0_15] : memref<3x2x256xf32, #tpu.memory_space<vmem>>, vector<1x2x256xf32>
    %14 = vector.shape_cast %13 : vector<1x2x256xf32> to vector<2x256xf32>
    %c0_16 = arith.constant 0 : index
    %c0_17 = arith.constant 0 : index
    %c0_18 = arith.constant 0 : index
    %15 = vector.load %arg6[%c0_16, %c0_17, %c0_18] : memref<3x2x1xf32, #tpu.memory_space<vmem>>, vector<1x2x1xf32>
    %16 = vector.shape_cast %15 : vector<1x2x1xf32> to vector<2x1xf32>
    %17 = arith.mulf %4, %4 : vector<2x256xf32>
    %cst = arith.constant dense<0.000000e+00> : vector<2xf32>
    %18 = vector.multi_reduction <add>, %17, %cst [1] : vector<2x256xf32> to vector<2xf32>
    %19 = vector.shape_cast %18 : vector<2xf32> to vector<2x1xf32>
    %20 = arith.addf %16, %19 : vector<2x1xf32>
    %c0_19 = arith.constant 0 : index
    %c0_20 = arith.constant 0 : index
    %c0_21 = arith.constant 0 : index
    %21 = vector.load %arg6[%c0_19, %c0_20, %c0_21] : memref<3x2x1xf32, #tpu.memory_space<vmem>>, vector<1x2x1xf32>
    %22 = vector.shape_cast %21 : vector<1x2x1xf32> to vector<2x1xf32>
    %23 = vector.shape_cast %20 : vector<2x1xf32> to vector<1x2x1xf32>
    tpu.vector_store %arg6[%c0_19, %c0_20, %c0_21], %23 {strides = array<i32>} : memref<3x2x1xf32, #tpu.memory_space<vmem>>, vector<1x2x1xf32>,
    %c1_22 = arith.constant 1 : index
    %c0_23 = arith.constant 0 : index
    %c0_24 = arith.constant 0 : index
    %24 = vector.load %arg6[%c1_22, %c0_23, %c0_24] : memref<3x2x1xf32, #tpu.memory_space<vmem>>, vector<1x2x1xf32>
    %25 = vector.shape_cast %24 : vector<1x2x1xf32> to vector<2x1xf32>
    %26 = arith.mulf %6, %6 : vector<2x256xf32>
    %cst_25 = arith.constant dense<0.000000e+00> : vector<2xf32>
    %27 = vector.multi_reduction <add>, %26, %cst_25 [1] : vector<2x256xf32> to vector<2xf32>
    %28 = vector.shape_cast %27 : vector<2xf32> to vector<2x1xf32>
    %29 = arith.addf %25, %28 : vector<2x1xf32>
    %c1_26 = arith.constant 1 : index
    %c0_27 = arith.constant 0 : index
    %c0_28 = arith.constant 0 : index
    %30 = vector.load %arg6[%c1_26, %c0_27, %c0_28] : memref<3x2x1xf32, #tpu.memory_space<vmem>>, vector<1x2x1xf32>
    %31 = vector.shape_cast %30 : vector<1x2x1xf32> to vector<2x1xf32>
    %32 = vector.shape_cast %29 : vector<2x1xf32> to vector<1x2x1xf32>
    tpu.vector_store %arg6[%c1_26, %c0_27, %c0_28], %32 {strides = array<i32>} : memref<3x2x1xf32, #tpu.memory_space<vmem>>, vector<1x2x1xf32>,
    %c2_29 = arith.constant 2 : index
    %c0_30 = arith.constant 0 : index
    %c0_31 = arith.constant 0 : index
    %33 = vector.load %arg6[%c2_29, %c0_30, %c0_31] : memref<3x2x1xf32, #tpu.memory_space<vmem>>, vector<1x2x1xf32>
    %34 = vector.shape_cast %33 : vector<1x2x1xf32> to vector<2x1xf32>
    %35 = arith.mulf %8, %8 : vector<2x256xf32>
    %cst_32 = arith.constant dense<0.000000e+00> : vector<2xf32>
    %36 = vector.multi_reduction <add>, %35, %cst_32 [1] : vector<2x256xf32> to vector<2xf32>
    %37 = vector.shape_cast %36 : vector<2xf32> to vector<2x1xf32>
    %38 = arith.addf %34, %37 : vector<2x1xf32>
    %c2_33 = arith.constant 2 : index
    %c0_34 = arith.constant 0 : index
    %c0_35 = arith.constant 0 : index
    %39 = vector.load %arg6[%c2_33, %c0_34, %c0_35] : memref<3x2x1xf32, #tpu.memory_space<vmem>>, vector<1x2x1xf32>
    %40 = vector.shape_cast %39 : vector<1x2x1xf32> to vector<2x1xf32>
    %41 = vector.shape_cast %38 : vector<2x1xf32> to vector<1x2x1xf32>
    tpu.vector_store %arg6[%c2_33, %c0_34, %c0_35], %41 {strides = array<i32>} : memref<3x2x1xf32, #tpu.memory_space<vmem>>, vector<1x2x1xf32>,
    %c0_36 = arith.constant 0 : index
    %c0_37 = arith.constant 0 : index
    %c0_38 = arith.constant 0 : index
    %42 = vector.load %arg7[%c0_36, %c0_37, %c0_38] : memref<3x2x1xf32, #tpu.memory_space<vmem>>, vector<1x2x1xf32>
    %43 = vector.shape_cast %42 : vector<1x2x1xf32> to vector<2x1xf32>
    %44 = arith.mulf %10, %10 : vector<2x256xf32>
    %cst_39 = arith.constant dense<0.000000e+00> : vector<2xf32>
    %45 = vector.multi_reduction <add>, %44, %cst_39 [1] : vector<2x256xf32> to vector<2xf32>
    %46 = vector.shape_cast %45 : vector<2xf32> to vector<2x1xf32>
    %47 = arith.addf %43, %46 : vector<2x1xf32>
    %c0_40 = arith.constant 0 : index
    %c0_41 = arith.constant 0 : index
    %c0_42 = arith.constant 0 : index
    %48 = vector.load %arg7[%c0_40, %c0_41, %c0_42] : memref<3x2x1xf32, #tpu.memory_space<vmem>>, vector<1x2x1xf32>
    %49 = vector.shape_cast %48 : vector<1x2x1xf32> to vector<2x1xf32>
    %50 = vector.shape_cast %47 : vector<2x1xf32> to vector<1x2x1xf32>
    tpu.vector_store %arg7[%c0_40, %c0_41, %c0_42], %50 {strides = array<i32>} : memref<3x2x1xf32, #tpu.memory_space<vmem>>, vector<1x2x1xf32>,
    %c1_43 = arith.constant 1 : index
    %c0_44 = arith.constant 0 : index
    %c0_45 = arith.constant 0 : index
    %51 = vector.load %arg7[%c1_43, %c0_44, %c0_45] : memref<3x2x1xf32, #tpu.memory_space<vmem>>, vector<1x2x1xf32>
    %52 = vector.shape_cast %51 : vector<1x2x1xf32> to vector<2x1xf32>
    %53 = arith.mulf %12, %12 : vector<2x256xf32>
    %cst_46 = arith.constant dense<0.000000e+00> : vector<2xf32>
    %54 = vector.multi_reduction <add>, %53, %cst_46 [1] : vector<2x256xf32> to vector<2xf32>
    %55 = vector.shape_cast %54 : vector<2xf32> to vector<2x1xf32>
    %56 = arith.addf %52, %55 : vector<2x1xf32>
    %c1_47 = arith.constant 1 : index
    %c0_48 = arith.constant 0 : index
    %c0_49 = arith.constant 0 : index
    %57 = vector.load %arg7[%c1_47, %c0_48, %c0_49] : memref<3x2x1xf32, #tpu.memory_space<vmem>>, vector<1x2x1xf32>
    %58 = vector.shape_cast %57 : vector<1x2x1xf32> to vector<2x1xf32>
    %59 = vector.shape_cast %56 : vector<2x1xf32> to vector<1x2x1xf32>
    tpu.vector_store %arg7[%c1_47, %c0_48, %c0_49], %59 {strides = array<i32>} : memref<3x2x1xf32, #tpu.memory_space<vmem>>, vector<1x2x1xf32>,
    %c2_50 = arith.constant 2 : index
    %c0_51 = arith.constant 0 : index
    %c0_52 = arith.constant 0 : index
    %60 = vector.load %arg7[%c2_50, %c0_51, %c0_52] : memref<3x2x1xf32, #tpu.memory_space<vmem>>, vector<1x2x1xf32>
    %61 = vector.shape_cast %60 : vector<1x2x1xf32> to vector<2x1xf32>
    %62 = arith.mulf %14, %14 : vector<2x256xf32>
    %cst_53 = arith.constant dense<0.000000e+00> : vector<2xf32>
    %63 = vector.multi_reduction <add>, %62, %cst_53 [1] : vector<2x256xf32> to vector<2xf32>
    %64 = vector.shape_cast %63 : vector<2xf32> to vector<2x1xf32>
    %65 = arith.addf %61, %64 : vector<2x1xf32>
    %c2_54 = arith.constant 2 : index
    %c0_55 = arith.constant 0 : index
    %c0_56 = arith.constant 0 : index
    %66 = vector.load %arg7[%c2_54, %c0_55, %c0_56] : memref<3x2x1xf32, #tpu.memory_space<vmem>>, vector<1x2x1xf32>
    %67 = vector.shape_cast %66 : vector<1x2x1xf32> to vector<2x1xf32>
    %68 = vector.shape_cast %65 : vector<2x1xf32> to vector<1x2x1xf32>
    tpu.vector_store %arg7[%c2_54, %c0_55, %c0_56], %68 {strides = array<i32>} : memref<3x2x1xf32, #tpu.memory_space<vmem>>, vector<1x2x1xf32>,
    %c0_57 = arith.constant 0 : index
    %c0_58 = arith.constant 0 : index
    %c0_59 = arith.constant 0 : index
    %69 = vector.load %arg5[%c0_57, %c0_58, %c0_59] : memref<9x2x1xf32, #tpu.memory_space<vmem>>, vector<1x2x1xf32>
    %70 = vector.shape_cast %69 : vector<1x2x1xf32> to vector<2x1xf32>
    %71 = arith.mulf %4, %10 : vector<2x256xf32>
    %cst_60 = arith.constant dense<0.000000e+00> : vector<2xf32>
    %72 = vector.multi_reduction <add>, %71, %cst_60 [1] : vector<2x256xf32> to vector<2xf32>
    %73 = vector.shape_cast %72 : vector<2xf32> to vector<2x1xf32>
    %74 = arith.addf %70, %73 : vector<2x1xf32>
    %c0_61 = arith.constant 0 : index
    %c0_62 = arith.constant 0 : index
    %c0_63 = arith.constant 0 : index
    %75 = vector.load %arg5[%c0_61, %c0_62, %c0_63] : memref<9x2x1xf32, #tpu.memory_space<vmem>>, vector<1x2x1xf32>
    %76 = vector.shape_cast %75 : vector<1x2x1xf32> to vector<2x1xf32>
    %77 = vector.shape_cast %74 : vector<2x1xf32> to vector<1x2x1xf32>
    tpu.vector_store %arg5[%c0_61, %c0_62, %c0_63], %77 {strides = array<i32>} : memref<9x2x1xf32, #tpu.memory_space<vmem>>, vector<1x2x1xf32>,
    %c1_64 = arith.constant 1 : index
    %c0_65 = arith.constant 0 : index
    %c0_66 = arith.constant 0 : index
    %78 = vector.load %arg5[%c1_64, %c0_65, %c0_66] : memref<9x2x1xf32, #tpu.memory_space<vmem>>, vector<1x2x1xf32>
    %79 = vector.shape_cast %78 : vector<1x2x1xf32> to vector<2x1xf32>
    %80 = arith.mulf %4, %12 : vector<2x256xf32>
    %cst_67 = arith.constant dense<0.000000e+00> : vector<2xf32>
    %81 = vector.multi_reduction <add>, %80, %cst_67 [1] : vector<2x256xf32> to vector<2xf32>
    %82 = vector.shape_cast %81 : vector<2xf32> to vector<2x1xf32>
    %83 = arith.addf %79, %82 : vector<2x1xf32>
    %c1_68 = arith.constant 1 : index
    %c0_69 = arith.constant 0 : index
    %c0_70 = arith.constant 0 : index
    %84 = vector.load %arg5[%c1_68, %c0_69, %c0_70] : memref<9x2x1xf32, #tpu.memory_space<vmem>>, vector<1x2x1xf32>
    %85 = vector.shape_cast %84 : vector<1x2x1xf32> to vector<2x1xf32>
    %86 = vector.shape_cast %83 : vector<2x1xf32> to vector<1x2x1xf32>
    tpu.vector_store %arg5[%c1_68, %c0_69, %c0_70], %86 {strides = array<i32>} : memref<9x2x1xf32, #tpu.memory_space<vmem>>, vector<1x2x1xf32>,
    %c2_71 = arith.constant 2 : index
    %c0_72 = arith.constant 0 : index
    %c0_73 = arith.constant 0 : index
    %87 = vector.load %arg5[%c2_71, %c0_72, %c0_73] : memref<9x2x1xf32, #tpu.memory_space<vmem>>, vector<1x2x1xf32>
    %88 = vector.shape_cast %87 : vector<1x2x1xf32> to vector<2x1xf32>
    %89 = arith.mulf %4, %14 : vector<2x256xf32>
    %cst_74 = arith.constant dense<0.000000e+00> : vector<2xf32>
    %90 = vector.multi_reduction <add>, %89, %cst_74 [1] : vector<2x256xf32> to vector<2xf32>
    %91 = vector.shape_cast %90 : vector<2xf32> to vector<2x1xf32>
    %92 = arith.addf %88, %91 : vector<2x1xf32>
    %c2_75 = arith.constant 2 : index
    %c0_76 = arith.constant 0 : index
    %c0_77 = arith.constant 0 : index
    %93 = vector.load %arg5[%c2_75, %c0_76, %c0_77] : memref<9x2x1xf32, #tpu.memory_space<vmem>>, vector<1x2x1xf32>
    %94 = vector.shape_cast %93 : vector<1x2x1xf32> to vector<2x1xf32>
    %95 = vector.shape_cast %92 : vector<2x1xf32> to vector<1x2x1xf32>
    tpu.vector_store %arg5[%c2_75, %c0_76, %c0_77], %95 {strides = array<i32>} : memref<9x2x1xf32, #tpu.memory_space<vmem>>, vector<1x2x1xf32>,
    %c3 = arith.constant 3 : index
    %c0_78 = arith.constant 0 : index
    %c0_79 = arith.constant 0 : index
    %96 = vector.load %arg5[%c3, %c0_78, %c0_79] : memref<9x2x1xf32, #tpu.memory_space<vmem>>, vector<1x2x1xf32>
    %97 = vector.shape_cast %96 : vector<1x2x1xf32> to vector<2x1xf32>
    %98 = arith.mulf %6, %10 : vector<2x256xf32>
    %cst_80 = arith.constant dense<0.000000e+00> : vector<2xf32>
    %99 = vector.multi_reduction <add>, %98, %cst_80 [1] : vector<2x256xf32> to vector<2xf32>
    %100 = vector.shape_cast %99 : vector<2xf32> to vector<2x1xf32>
    %101 = arith.addf %97, %100 : vector<2x1xf32>
    %c3_81 = arith.constant 3 : index
    %c0_82 = arith.constant 0 : index
    %c0_83 = arith.constant 0 : index
    %102 = vector.load %arg5[%c3_81, %c0_82, %c0_83] : memref<9x2x1xf32, #tpu.memory_space<vmem>>, vector<1x2x1xf32>
    %103 = vector.shape_cast %102 : vector<1x2x1xf32> to vector<2x1xf32>
    %104 = vector.shape_cast %101 : vector<2x1xf32> to vector<1x2x1xf32>
    tpu.vector_store %arg5[%c3_81, %c0_82, %c0_83], %104 {strides = array<i32>} : memref<9x2x1xf32, #tpu.memory_space<vmem>>, vector<1x2x1xf32>,
    %c4 = arith.constant 4 : index
    %c0_84 = arith.constant 0 : index
    %c0_85 = arith.constant 0 : index
    %105 = vector.load %arg5[%c4, %c0_84, %c0_85] : memref<9x2x1xf32, #tpu.memory_space<vmem>>, vector<1x2x1xf32>
    %106 = vector.shape_cast %105 : vector<1x2x1xf32> to vector<2x1xf32>
    %107 = arith.mulf %6, %12 : vector<2x256xf32>
    %cst_86 = arith.constant dense<0.000000e+00> : vector<2xf32>
    %108 = vector.multi_reduction <add>, %107, %cst_86 [1] : vector<2x256xf32> to vector<2xf32>
    %109 = vector.shape_cast %108 : vector<2xf32> to vector<2x1xf32>
    %110 = arith.addf %106, %109 : vector<2x1xf32>
    %c4_87 = arith.constant 4 : index
    %c0_88 = arith.constant 0 : index
    %c0_89 = arith.constant 0 : index
    %111 = vector.load %arg5[%c4_87, %c0_88, %c0_89] : memref<9x2x1xf32, #tpu.memory_space<vmem>>, vector<1x2x1xf32>
    %112 = vector.shape_cast %111 : vector<1x2x1xf32> to vector<2x1xf32>
    %113 = vector.shape_cast %110 : vector<2x1xf32> to vector<1x2x1xf32>
    tpu.vector_store %arg5[%c4_87, %c0_88, %c0_89], %113 {strides = array<i32>} : memref<9x2x1xf32, #tpu.memory_space<vmem>>, vector<1x2x1xf32>,
    %c5 = arith.constant 5 : index
    %c0_90 = arith.constant 0 : index
    %c0_91 = arith.constant 0 : index
    %114 = vector.load %arg5[%c5, %c0_90, %c0_91] : memref<9x2x1xf32, #tpu.memory_space<vmem>>, vector<1x2x1xf32>
    %115 = vector.shape_cast %114 : vector<1x2x1xf32> to vector<2x1xf32>
    %116 = arith.mulf %6, %14 : vector<2x256xf32>
    %cst_92 = arith.constant dense<0.000000e+00> : vector<2xf32>
    %117 = vector.multi_reduction <add>, %116, %cst_92 [1] : vector<2x256xf32> to vector<2xf32>
    %118 = vector.shape_cast %117 : vector<2xf32> to vector<2x1xf32>
    %119 = arith.addf %115, %118 : vector<2x1xf32>
    %c5_93 = arith.constant 5 : index
    %c0_94 = arith.constant 0 : index
    %c0_95 = arith.constant 0 : index
    %120 = vector.load %arg5[%c5_93, %c0_94, %c0_95] : memref<9x2x1xf32, #tpu.memory_space<vmem>>, vector<1x2x1xf32>
    %121 = vector.shape_cast %120 : vector<1x2x1xf32> to vector<2x1xf32>
    %122 = vector.shape_cast %119 : vector<2x1xf32> to vector<1x2x1xf32>
    tpu.vector_store %arg5[%c5_93, %c0_94, %c0_95], %122 {strides = array<i32>} : memref<9x2x1xf32, #tpu.memory_space<vmem>>, vector<1x2x1xf32>,
    %c6 = arith.constant 6 : index
    %c0_96 = arith.constant 0 : index
    %c0_97 = arith.constant 0 : index
    %123 = vector.load %arg5[%c6, %c0_96, %c0_97] : memref<9x2x1xf32, #tpu.memory_space<vmem>>, vector<1x2x1xf32>
    %124 = vector.shape_cast %123 : vector<1x2x1xf32> to vector<2x1xf32>
    %125 = arith.mulf %8, %10 : vector<2x256xf32>
    %cst_98 = arith.constant dense<0.000000e+00> : vector<2xf32>
    %126 = vector.multi_reduction <add>, %125, %cst_98 [1] : vector<2x256xf32> to vector<2xf32>
    %127 = vector.shape_cast %126 : vector<2xf32> to vector<2x1xf32>
    %128 = arith.addf %124, %127 : vector<2x1xf32>
    %c6_99 = arith.constant 6 : index
    %c0_100 = arith.constant 0 : index
    %c0_101 = arith.constant 0 : index
    %129 = vector.load %arg5[%c6_99, %c0_100, %c0_101] : memref<9x2x1xf32, #tpu.memory_space<vmem>>, vector<1x2x1xf32>
    %130 = vector.shape_cast %129 : vector<1x2x1xf32> to vector<2x1xf32>
    %131 = vector.shape_cast %128 : vector<2x1xf32> to vector<1x2x1xf32>
    tpu.vector_store %arg5[%c6_99, %c0_100, %c0_101], %131 {strides = array<i32>} : memref<9x2x1xf32, #tpu.memory_space<vmem>>, vector<1x2x1xf32>,
    %c7 = arith.constant 7 : index
    %c0_102 = arith.constant 0 : index
    %c0_103 = arith.constant 0 : index
    %132 = vector.load %arg5[%c7, %c0_102, %c0_103] : memref<9x2x1xf32, #tpu.memory_space<vmem>>, vector<1x2x1xf32>
    %133 = vector.shape_cast %132 : vector<1x2x1xf32> to vector<2x1xf32>
    %134 = arith.mulf %8, %12 : vector<2x256xf32>
    %cst_104 = arith.constant dense<0.000000e+00> : vector<2xf32>
    %135 = vector.multi_reduction <add>, %134, %cst_104 [1] : vector<2x256xf32> to vector<2xf32>
    %136 = vector.shape_cast %135 : vector<2xf32> to vector<2x1xf32>
    %137 = arith.addf %133, %136 : vector<2x1xf32>
    %c7_105 = arith.constant 7 : index
    %c0_106 = arith.constant 0 : index
    %c0_107 = arith.constant 0 : index
    %138 = vector.load %arg5[%c7_105, %c0_106, %c0_107] : memref<9x2x1xf32, #tpu.memory_space<vmem>>, vector<1x2x1xf32>
    %139 = vector.shape_cast %138 : vector<1x2x1xf32> to vector<2x1xf32>
    %140 = vector.shape_cast %137 : vector<2x1xf32> to vector<1x2x1xf32>
    tpu.vector_store %arg5[%c7_105, %c0_106, %c0_107], %140 {strides = array<i32>} : memref<9x2x1xf32, #tpu.memory_space<vmem>>, vector<1x2x1xf32>,
    %c8 = arith.constant 8 : index
    %c0_108 = arith.constant 0 : index
    %c0_109 = arith.constant 0 : index
    %141 = vector.load %arg5[%c8, %c0_108, %c0_109] : memref<9x2x1xf32, #tpu.memory_space<vmem>>, vector<1x2x1xf32>
    %142 = vector.shape_cast %141 : vector<1x2x1xf32> to vector<2x1xf32>
    %143 = arith.mulf %8, %14 : vector<2x256xf32>
    %cst_110 = arith.constant dense<0.000000e+00> : vector<2xf32>
    %144 = vector.multi_reduction <add>, %143, %cst_110 [1] : vector<2x256xf32> to vector<2xf32>
    %145 = vector.shape_cast %144 : vector<2xf32> to vector<2x1xf32>
    %146 = arith.addf %142, %145 : vector<2x1xf32>
    %c8_111 = arith.constant 8 : index
    %c0_112 = arith.constant 0 : index
    %c0_113 = arith.constant 0 : index
    %147 = vector.load %arg5[%c8_111, %c0_112, %c0_113] : memref<9x2x1xf32, #tpu.memory_space<vmem>>, vector<1x2x1xf32>
    %148 = vector.shape_cast %147 : vector<1x2x1xf32> to vector<2x1xf32>
    %149 = vector.shape_cast %146 : vector<2x1xf32> to vector<1x2x1xf32>
    tpu.vector_store %arg5[%c8_111, %c0_112, %c0_113], %149 {strides = array<i32>} : memref<9x2x1xf32, #tpu.memory_space<vmem>>, vector<1x2x1xf32>,
    %c0_i32_114 = arith.constant 0 : i32
    %150 = arith.cmpi eq, %arg1, %c0_i32_114 : i32
    %151 = arith.extui %150 : i1 to i32
    %c0_i32_115 = arith.constant 0 : i32
    %152 = arith.cmpi ne, %151, %c0_i32_115 : i32
    scf.if %152 {
      %c0_116 = arith.constant 0 : index
      %c0_117 = arith.constant 0 : index
      %c0_118 = arith.constant 0 : index
      %153 = vector.load %arg6[%c0_116, %c0_117, %c0_118] : memref<3x2x1xf32, #tpu.memory_space<vmem>>, vector<1x2x1xf32>
      %154 = vector.shape_cast %153 : vector<1x2x1xf32> to vector<2x1xf32>
      %c1_119 = arith.constant 1 : index
      %c0_120 = arith.constant 0 : index
      %c0_121 = arith.constant 0 : index
      %155 = vector.load %arg6[%c1_119, %c0_120, %c0_121] : memref<3x2x1xf32, #tpu.memory_space<vmem>>, vector<1x2x1xf32>
      %156 = vector.shape_cast %155 : vector<1x2x1xf32> to vector<2x1xf32>
      %c2_122 = arith.constant 2 : index
      %c0_123 = arith.constant 0 : index
      %c0_124 = arith.constant 0 : index
      %157 = vector.load %arg6[%c2_122, %c0_123, %c0_124] : memref<3x2x1xf32, #tpu.memory_space<vmem>>, vector<1x2x1xf32>
      %158 = vector.shape_cast %157 : vector<1x2x1xf32> to vector<2x1xf32>
      %c0_125 = arith.constant 0 : index
      %c0_126 = arith.constant 0 : index
      %c0_127 = arith.constant 0 : index
      %159 = vector.load %arg7[%c0_125, %c0_126, %c0_127] : memref<3x2x1xf32, #tpu.memory_space<vmem>>, vector<1x2x1xf32>
      %160 = vector.shape_cast %159 : vector<1x2x1xf32> to vector<2x1xf32>
      %c1_128 = arith.constant 1 : index
      %c0_129 = arith.constant 0 : index
      %c0_130 = arith.constant 0 : index
      %161 = vector.load %arg7[%c1_128, %c0_129, %c0_130] : memref<3x2x1xf32, #tpu.memory_space<vmem>>, vector<1x2x1xf32>
      %162 = vector.shape_cast %161 : vector<1x2x1xf32> to vector<2x1xf32>
      %c2_131 = arith.constant 2 : index
      %c0_132 = arith.constant 0 : index
      %c0_133 = arith.constant 0 : index
      %163 = vector.load %arg7[%c2_131, %c0_132, %c0_133] : memref<3x2x1xf32, #tpu.memory_space<vmem>>, vector<1x2x1xf32>
      %164 = vector.shape_cast %163 : vector<1x2x1xf32> to vector<2x1xf32>
      %cst_134 = arith.constant 9.99999971E-10 : f32
      %165 = vector.broadcast %cst_134 : f32 to vector<2x1xf32>
      %166 = arith.addf %160, %165 : vector<2x1xf32>
      %cst_135 = arith.constant 1.000000e+00 : f32
      %167 = vector.broadcast %cst_135 : f32 to vector<2x1xf32>
      %168 = arith.divf %167, %166 : vector<2x1xf32>
      %cst_136 = arith.constant 9.99999971E-10 : f32
      %169 = vector.broadcast %cst_136 : f32 to vector<2x1xf32>
      %170 = arith.addf %162, %169 : vector<2x1xf32>
      %cst_137 = arith.constant 1.000000e+00 : f32
      %171 = vector.broadcast %cst_137 : f32 to vector<2x1xf32>
      %172 = arith.divf %171, %170 : vector<2x1xf32>
      %cst_138 = arith.constant 9.99999971E-10 : f32
      %173 = vector.broadcast %cst_138 : f32 to vector<2x1xf32>
      %174 = arith.addf %164, %173 : vector<2x1xf32>
      %cst_139 = arith.constant 1.000000e+00 : f32
      %175 = vector.broadcast %cst_139 : f32 to vector<2x1xf32>
      %176 = arith.divf %175, %174 : vector<2x1xf32>
      %c0_140 = arith.constant 0 : index
      %c0_141 = arith.constant 0 : index
      %c0_142 = arith.constant 0 : index
      %177 = vector.load %arg5[%c0_140, %c0_141, %c0_142] : memref<9x2x1xf32, #tpu.memory_space<vmem>>, vector<1x2x1xf32>
      %178 = vector.shape_cast %177 : vector<1x2x1xf32> to vector<2x1xf32>
      %179 = arith.mulf %178, %168 : vector<2x1xf32>
      %180 = arith.mulf %179, %179 : vector<2x1xf32>
      %181 = arith.mulf %180, %160 : vector<2x1xf32>
      %cst_143 = arith.constant 2.000000e+00 : f32
      %182 = vector.broadcast %cst_143 : f32 to vector<2x1xf32>
      %183 = arith.mulf %182, %179 : vector<2x1xf32>
      %184 = arith.mulf %183, %178 : vector<2x1xf32>
      %185 = arith.subf %154, %184 : vector<2x1xf32>
      %186 = arith.addf %185, %181 : vector<2x1xf32>
      %cst_144 = arith.constant 0.000000e+00 : f32
      %187 = vector.broadcast %cst_144 : f32 to vector<2x1xf32>
      %188 = arith.maximumf %186, %187 : vector<2x1xf32>
      %cst_145 = arith.constant 9.99999971E-10 : f32
      %189 = vector.broadcast %cst_145 : f32 to vector<2x1xf32>
      %190 = arith.addf %188, %189 : vector<2x1xf32>
      %191 = arith.divf %181, %190 : vector<2x1xf32>
      %192 = math.log %191 : vector<2x1xf32>
      %cst_146 = arith.constant 4.34294462 : f32
      %193 = vector.broadcast %cst_146 : f32 to vector<2x1xf32>
      %194 = arith.mulf %193, %192 : vector<2x1xf32>
      %c1_147 = arith.constant 1 : index
      %c0_148 = arith.constant 0 : index
      %c0_149 = arith.constant 0 : index
      %195 = vector.load %arg5[%c1_147, %c0_148, %c0_149] : memref<9x2x1xf32, #tpu.memory_space<vmem>>, vector<1x2x1xf32>
      %196 = vector.shape_cast %195 : vector<1x2x1xf32> to vector<2x1xf32>
      %197 = arith.mulf %196, %172 : vector<2x1xf32>
      %198 = arith.mulf %197, %197 : vector<2x1xf32>
      %199 = arith.mulf %198, %162 : vector<2x1xf32>
      %cst_150 = arith.constant 2.000000e+00 : f32
      %200 = vector.broadcast %cst_150 : f32 to vector<2x1xf32>
      %201 = arith.mulf %200, %197 : vector<2x1xf32>
      %202 = arith.mulf %201, %196 : vector<2x1xf32>
      %203 = arith.subf %154, %202 : vector<2x1xf32>
      %204 = arith.addf %203, %199 : vector<2x1xf32>
      %cst_151 = arith.constant 0.000000e+00 : f32
      %205 = vector.broadcast %cst_151 : f32 to vector<2x1xf32>
      %206 = arith.maximumf %204, %205 : vector<2x1xf32>
      %cst_152 = arith.constant 9.99999971E-10 : f32
      %207 = vector.broadcast %cst_152 : f32 to vector<2x1xf32>
      %208 = arith.addf %206, %207 : vector<2x1xf32>
      %209 = arith.divf %199, %208 : vector<2x1xf32>
      %210 = math.log %209 : vector<2x1xf32>
      %cst_153 = arith.constant 4.34294462 : f32
      %211 = vector.broadcast %cst_153 : f32 to vector<2x1xf32>
      %212 = arith.mulf %211, %210 : vector<2x1xf32>
      %c2_154 = arith.constant 2 : index
      %c0_155 = arith.constant 0 : index
      %c0_156 = arith.constant 0 : index
      %213 = vector.load %arg5[%c2_154, %c0_155, %c0_156] : memref<9x2x1xf32, #tpu.memory_space<vmem>>, vector<1x2x1xf32>
      %214 = vector.shape_cast %213 : vector<1x2x1xf32> to vector<2x1xf32>
      %215 = arith.mulf %214, %176 : vector<2x1xf32>
      %216 = arith.mulf %215, %215 : vector<2x1xf32>
      %217 = arith.mulf %216, %164 : vector<2x1xf32>
      %cst_157 = arith.constant 2.000000e+00 : f32
      %218 = vector.broadcast %cst_157 : f32 to vector<2x1xf32>
      %219 = arith.mulf %218, %215 : vector<2x1xf32>
      %220 = arith.mulf %219, %214 : vector<2x1xf32>
      %221 = arith.subf %154, %220 : vector<2x1xf32>
      %222 = arith.addf %221, %217 : vector<2x1xf32>
      %cst_158 = arith.constant 0.000000e+00 : f32
      %223 = vector.broadcast %cst_158 : f32 to vector<2x1xf32>
      %224 = arith.maximumf %222, %223 : vector<2x1xf32>
      %cst_159 = arith.constant 9.99999971E-10 : f32
      %225 = vector.broadcast %cst_159 : f32 to vector<2x1xf32>
      %226 = arith.addf %224, %225 : vector<2x1xf32>
      %227 = arith.divf %217, %226 : vector<2x1xf32>
      %228 = math.log %227 : vector<2x1xf32>
      %cst_160 = arith.constant 4.34294462 : f32
      %229 = vector.broadcast %cst_160 : f32 to vector<2x1xf32>
      %230 = arith.mulf %229, %228 : vector<2x1xf32>
      %c3_161 = arith.constant 3 : index
      %c0_162 = arith.constant 0 : index
      %c0_163 = arith.constant 0 : index
      %231 = vector.load %arg5[%c3_161, %c0_162, %c0_163] : memref<9x2x1xf32, #tpu.memory_space<vmem>>, vector<1x2x1xf32>
      %232 = vector.shape_cast %231 : vector<1x2x1xf32> to vector<2x1xf32>
      %233 = arith.mulf %232, %168 : vector<2x1xf32>
      %234 = arith.mulf %233, %233 : vector<2x1xf32>
      %235 = arith.mulf %234, %160 : vector<2x1xf32>
      %cst_164 = arith.constant 2.000000e+00 : f32
      %236 = vector.broadcast %cst_164 : f32 to vector<2x1xf32>
      %237 = arith.mulf %236, %233 : vector<2x1xf32>
      %238 = arith.mulf %237, %232 : vector<2x1xf32>
      %239 = arith.subf %156, %238 : vector<2x1xf32>
      %240 = arith.addf %239, %235 : vector<2x1xf32>
      %cst_165 = arith.constant 0.000000e+00 : f32
      %241 = vector.broadcast %cst_165 : f32 to vector<2x1xf32>
      %242 = arith.maximumf %240, %241 : vector<2x1xf32>
      %cst_166 = arith.constant 9.99999971E-10 : f32
      %243 = vector.broadcast %cst_166 : f32 to vector<2x1xf32>
      %244 = arith.addf %242, %243 : vector<2x1xf32>
      %245 = arith.divf %235, %244 : vector<2x1xf32>
      %246 = math.log %245 : vector<2x1xf32>
      %cst_167 = arith.constant 4.34294462 : f32
      %247 = vector.broadcast %cst_167 : f32 to vector<2x1xf32>
      %248 = arith.mulf %247, %246 : vector<2x1xf32>
      %c4_168 = arith.constant 4 : index
      %c0_169 = arith.constant 0 : index
      %c0_170 = arith.constant 0 : index
      %249 = vector.load %arg5[%c4_168, %c0_169, %c0_170] : memref<9x2x1xf32, #tpu.memory_space<vmem>>, vector<1x2x1xf32>
      %250 = vector.shape_cast %249 : vector<1x2x1xf32> to vector<2x1xf32>
      %251 = arith.mulf %250, %172 : vector<2x1xf32>
      %252 = arith.mulf %251, %251 : vector<2x1xf32>
      %253 = arith.mulf %252, %162 : vector<2x1xf32>
      %cst_171 = arith.constant 2.000000e+00 : f32
      %254 = vector.broadcast %cst_171 : f32 to vector<2x1xf32>
      %255 = arith.mulf %254, %251 : vector<2x1xf32>
      %256 = arith.mulf %255, %250 : vector<2x1xf32>
      %257 = arith.subf %156, %256 : vector<2x1xf32>
      %258 = arith.addf %257, %253 : vector<2x1xf32>
      %cst_172 = arith.constant 0.000000e+00 : f32
      %259 = vector.broadcast %cst_172 : f32 to vector<2x1xf32>
      %260 = arith.maximumf %258, %259 : vector<2x1xf32>
      %cst_173 = arith.constant 9.99999971E-10 : f32
      %261 = vector.broadcast %cst_173 : f32 to vector<2x1xf32>
      %262 = arith.addf %260, %261 : vector<2x1xf32>
      %263 = arith.divf %253, %262 : vector<2x1xf32>
      %264 = math.log %263 : vector<2x1xf32>
      %cst_174 = arith.constant 4.34294462 : f32
      %265 = vector.broadcast %cst_174 : f32 to vector<2x1xf32>
      %266 = arith.mulf %265, %264 : vector<2x1xf32>
      %c5_175 = arith.constant 5 : index
      %c0_176 = arith.constant 0 : index
      %c0_177 = arith.constant 0 : index
      %267 = vector.load %arg5[%c5_175, %c0_176, %c0_177] : memref<9x2x1xf32, #tpu.memory_space<vmem>>, vector<1x2x1xf32>
      %268 = vector.shape_cast %267 : vector<1x2x1xf32> to vector<2x1xf32>
      %269 = arith.mulf %268, %176 : vector<2x1xf32>
      %270 = arith.mulf %269, %269 : vector<2x1xf32>
      %271 = arith.mulf %270, %164 : vector<2x1xf32>
      %cst_178 = arith.constant 2.000000e+00 : f32
      %272 = vector.broadcast %cst_178 : f32 to vector<2x1xf32>
      %273 = arith.mulf %272, %269 : vector<2x1xf32>
      %274 = arith.mulf %273, %268 : vector<2x1xf32>
      %275 = arith.subf %156, %274 : vector<2x1xf32>
      %276 = arith.addf %275, %271 : vector<2x1xf32>
      %cst_179 = arith.constant 0.000000e+00 : f32
      %277 = vector.broadcast %cst_179 : f32 to vector<2x1xf32>
      %278 = arith.maximumf %276, %277 : vector<2x1xf32>
      %cst_180 = arith.constant 9.99999971E-10 : f32
      %279 = vector.broadcast %cst_180 : f32 to vector<2x1xf32>
      %280 = arith.addf %278, %279 : vector<2x1xf32>
      %281 = arith.divf %271, %280 : vector<2x1xf32>
      %282 = math.log %281 : vector<2x1xf32>
      %cst_181 = arith.constant 4.34294462 : f32
      %283 = vector.broadcast %cst_181 : f32 to vector<2x1xf32>
      %284 = arith.mulf %283, %282 : vector<2x1xf32>
      %c6_182 = arith.constant 6 : index
      %c0_183 = arith.constant 0 : index
      %c0_184 = arith.constant 0 : index
      %285 = vector.load %arg5[%c6_182, %c0_183, %c0_184] : memref<9x2x1xf32, #tpu.memory_space<vmem>>, vector<1x2x1xf32>
      %286 = vector.shape_cast %285 : vector<1x2x1xf32> to vector<2x1xf32>
      %287 = arith.mulf %286, %168 : vector<2x1xf32>
      %288 = arith.mulf %287, %287 : vector<2x1xf32>
      %289 = arith.mulf %288, %160 : vector<2x1xf32>
      %cst_185 = arith.constant 2.000000e+00 : f32
      %290 = vector.broadcast %cst_185 : f32 to vector<2x1xf32>
      %291 = arith.mulf %290, %287 : vector<2x1xf32>
      %292 = arith.mulf %291, %286 : vector<2x1xf32>
      %293 = arith.subf %158, %292 : vector<2x1xf32>
      %294 = arith.addf %293, %289 : vector<2x1xf32>
      %cst_186 = arith.constant 0.000000e+00 : f32
      %295 = vector.broadcast %cst_186 : f32 to vector<2x1xf32>
      %296 = arith.maximumf %294, %295 : vector<2x1xf32>
      %cst_187 = arith.constant 9.99999971E-10 : f32
      %297 = vector.broadcast %cst_187 : f32 to vector<2x1xf32>
      %298 = arith.addf %296, %297 : vector<2x1xf32>
      %299 = arith.divf %289, %298 : vector<2x1xf32>
      %300 = math.log %299 : vector<2x1xf32>
      %cst_188 = arith.constant 4.34294462 : f32
      %301 = vector.broadcast %cst_188 : f32 to vector<2x1xf32>
      %302 = arith.mulf %301, %300 : vector<2x1xf32>
      %c7_189 = arith.constant 7 : index
      %c0_190 = arith.constant 0 : index
      %c0_191 = arith.constant 0 : index
      %303 = vector.load %arg5[%c7_189, %c0_190, %c0_191] : memref<9x2x1xf32, #tpu.memory_space<vmem>>, vector<1x2x1xf32>
      %304 = vector.shape_cast %303 : vector<1x2x1xf32> to vector<2x1xf32>
      %305 = arith.mulf %304, %172 : vector<2x1xf32>
      %306 = arith.mulf %305, %305 : vector<2x1xf32>
      %307 = arith.mulf %306, %162 : vector<2x1xf32>
      %cst_192 = arith.constant 2.000000e+00 : f32
      %308 = vector.broadcast %cst_192 : f32 to vector<2x1xf32>
      %309 = arith.mulf %308, %305 : vector<2x1xf32>
      %310 = arith.mulf %309, %304 : vector<2x1xf32>
      %311 = arith.subf %158, %310 : vector<2x1xf32>
      %312 = arith.addf %311, %307 : vector<2x1xf32>
      %cst_193 = arith.constant 0.000000e+00 : f32
      %313 = vector.broadcast %cst_193 : f32 to vector<2x1xf32>
      %314 = arith.maximumf %312, %313 : vector<2x1xf32>
      %cst_194 = arith.constant 9.99999971E-10 : f32
      %315 = vector.broadcast %cst_194 : f32 to vector<2x1xf32>
      %316 = arith.addf %314, %315 : vector<2x1xf32>
      %317 = arith.divf %307, %316 : vector<2x1xf32>
      %318 = math.log %317 : vector<2x1xf32>
      %cst_195 = arith.constant 4.34294462 : f32
      %319 = vector.broadcast %cst_195 : f32 to vector<2x1xf32>
      %320 = arith.mulf %319, %318 : vector<2x1xf32>
      %c8_196 = arith.constant 8 : index
      %c0_197 = arith.constant 0 : index
      %c0_198 = arith.constant 0 : index
      %321 = vector.load %arg5[%c8_196, %c0_197, %c0_198] : memref<9x2x1xf32, #tpu.memory_space<vmem>>, vector<1x2x1xf32>
      %322 = vector.shape_cast %321 : vector<1x2x1xf32> to vector<2x1xf32>
      %323 = arith.mulf %322, %176 : vector<2x1xf32>
      %324 = arith.mulf %323, %323 : vector<2x1xf32>
      %325 = arith.mulf %324, %164 : vector<2x1xf32>
      %cst_199 = arith.constant 2.000000e+00 : f32
      %326 = vector.broadcast %cst_199 : f32 to vector<2x1xf32>
      %327 = arith.mulf %326, %323 : vector<2x1xf32>
      %328 = arith.mulf %327, %322 : vector<2x1xf32>
      %329 = arith.subf %158, %328 : vector<2x1xf32>
      %330 = arith.addf %329, %325 : vector<2x1xf32>
      %cst_200 = arith.constant 0.000000e+00 : f32
      %331 = vector.broadcast %cst_200 : f32 to vector<2x1xf32>
      %332 = arith.maximumf %330, %331 : vector<2x1xf32>
      %cst_201 = arith.constant 9.99999971E-10 : f32
      %333 = vector.broadcast %cst_201 : f32 to vector<2x1xf32>
      %334 = arith.addf %332, %333 : vector<2x1xf32>
      %335 = arith.divf %325, %334 : vector<2x1xf32>
      %336 = math.log %335 : vector<2x1xf32>
      %cst_202 = arith.constant 4.34294462 : f32
      %337 = vector.broadcast %cst_202 : f32 to vector<2x1xf32>
      %338 = arith.mulf %337, %336 : vector<2x1xf32>
      %cst_203 = arith.constant 0.000000e+00 : f32
      %339 = vector.broadcast %cst_203 : f32 to vector<2x1xf32>
      %340 = arith.addf %339, %194 : vector<2x1xf32>
      %341 = arith.addf %340, %266 : vector<2x1xf32>
      %342 = arith.addf %341, %338 : vector<2x1xf32>
      %cst_204 = arith.constant 0.333333343 : f32
      %343 = vector.broadcast %cst_204 : f32 to vector<2x1xf32>
      %344 = arith.mulf %342, %343 : vector<2x1xf32>
      %cst_205 = arith.constant 0.000000e+00 : f32
      %345 = vector.broadcast %cst_205 : f32 to vector<2x1xf32>
      %346 = arith.addf %345, %194 : vector<2x1xf32>
      %347 = arith.addf %346, %320 : vector<2x1xf32>
      %348 = arith.addf %347, %284 : vector<2x1xf32>
      %cst_206 = arith.constant 0.333333343 : f32
      %349 = vector.broadcast %cst_206 : f32 to vector<2x1xf32>
      %350 = arith.mulf %348, %349 : vector<2x1xf32>
      %cst_207 = arith.constant 0.000000e+00 : f32
      %351 = vector.broadcast %cst_207 : f32 to vector<2x1xf32>
      %352 = arith.addf %351, %248 : vector<2x1xf32>
      %353 = arith.addf %352, %212 : vector<2x1xf32>
      %354 = arith.addf %353, %338 : vector<2x1xf32>
      %cst_208 = arith.constant 0.333333343 : f32
      %355 = vector.broadcast %cst_208 : f32 to vector<2x1xf32>
      %356 = arith.mulf %354, %355 : vector<2x1xf32>
      %cst_209 = arith.constant 0.000000e+00 : f32
      %357 = vector.broadcast %cst_209 : f32 to vector<2x1xf32>
      %358 = arith.addf %357, %248 : vector<2x1xf32>
      %359 = arith.addf %358, %320 : vector<2x1xf32>
      %360 = arith.addf %359, %230 : vector<2x1xf32>
      %cst_210 = arith.constant 0.333333343 : f32
      %361 = vector.broadcast %cst_210 : f32 to vector<2x1xf32>
      %362 = arith.mulf %360, %361 : vector<2x1xf32>
      %cst_211 = arith.constant 0.000000e+00 : f32
      %363 = vector.broadcast %cst_211 : f32 to vector<2x1xf32>
      %364 = arith.addf %363, %302 : vector<2x1xf32>
      %365 = arith.addf %364, %212 : vector<2x1xf32>
      %366 = arith.addf %365, %284 : vector<2x1xf32>
      %cst_212 = arith.constant 0.333333343 : f32
      %367 = vector.broadcast %cst_212 : f32 to vector<2x1xf32>
      %368 = arith.mulf %366, %367 : vector<2x1xf32>
      %cst_213 = arith.constant 0.000000e+00 : f32
      %369 = vector.broadcast %cst_213 : f32 to vector<2x1xf32>
      %370 = arith.addf %369, %302 : vector<2x1xf32>
      %371 = arith.addf %370, %266 : vector<2x1xf32>
      %372 = arith.addf %371, %230 : vector<2x1xf32>
      %cst_214 = arith.constant 0.333333343 : f32
      %373 = vector.broadcast %cst_214 : f32 to vector<2x1xf32>
      %374 = arith.mulf %372, %373 : vector<2x1xf32>
      %375 = tpu.concatenate %344, %350, %356, %362, %368, %374 in 1 : vector<2x1xf32>, vector<2x1xf32>, vector<2x1xf32>, vector<2x1xf32>, vector<2x1xf32>, vector<2x1xf32> -> vector<2x6xf32>
      %c0_215 = arith.constant 0 : index
      %c0_216 = arith.constant 0 : index
      %376 = vector.load %arg4[%c0_215, %c0_216] : memref<2x6xf32, #tpu.memory_space<vmem>>, vector<2x6xf32>
      tpu.vector_store %arg4[%c0_215, %c0_216], %375 {strides = array<i32>} : memref<2x6xf32, #tpu.memory_space<vmem>>, vector<2x6xf32>,
    } else {
    }
    return
  }
  func.func @transform_0(%arg0: i32, %arg1: i32) -> (i32, i32, i32) {
    %c0_i32 = arith.constant 0 : i32
    %c0_i32_0 = arith.constant 0 : i32
    return %c0_i32, %arg0, %arg1 : i32, i32, i32
  }
  func.func @transform_1(%arg0: i32, %arg1: i32) -> (i32, i32, i32) {
    %c0_i32 = arith.constant 0 : i32
    %c0_i32_0 = arith.constant 0 : i32
    return %c0_i32, %arg0, %arg1 : i32, i32, i32
  }
  func.func @transform_2(%arg0: i32, %arg1: i32) -> (i32, i32) {
    %c0_i32 = arith.constant 0 : i32
    %c0_i32_0 = arith.constant 0 : i32
    return %arg0, %c0_i32 : i32, i32
  }
}

</mosaic_0001>

<llo_original>
// kernel: tpu_custom_call.1
$region0: #{tpu_custom_call.1}
  #allocation0 [shape = 'u32[]', space=smem, size = 0x4, offset = 0x4, fixed_abs, tag = 'smem constant byte address 0x4 - core index']
  #allocation1 [shape = 'u32[144,128]{1,0:T(1,128)}', space=vmem, size = 0x12000, scoped, tag = 'internal scratch']
  #allocation2 [shape = 'f32[9,2,1]{2,1,0:T(2,128)}', space=vmem, size = 0x2400, scoped, tag = 'scratch operand']
  #allocation3 [shape = 'f32[3,2,1]{2,1,0:T(2,128)}', space=vmem, size = 0xc00, scoped, tag = 'scratch operand']
  #allocation4 [shape = 'f32[3,2,1]{2,1,0:T(2,128)}', space=vmem, size = 0xc00, scoped, tag = 'scratch operand']
  %s0 = inlined_call_operand.hbm [shape: f32[3,2,256], index: 0, kind: input, shape index: {}]
  %s1 = inlined_call_operand.hbm [shape: f32[3,2,256], index: 1, kind: input, shape index: {}]
  %s2 = inlined_call_operand.hbm [shape: f32[2,6], index: 2, kind: output, shape index: {}]
  %s3 = sld [smem:[#allocation0]]
  $region34: #{tpu_custom_call.1} parent=0
    _
  %s5 = ssub.s32 1, %s3
  %s6 = scalar_select 0, %s5, %s3
  $region1: #{tpu_custom_call.1} parent=0
    #allocation5 [shape = 'u8[6144]{0}', space=vmem, size = 0x1800, scoped, tag = 'input window, operand 0, single buffered']
    #allocation6 [shape = 's32[1]{0}', space=sflag, size = 0x4, scoped, tag = 'scoped memory for tpu_custom_call.1']
    #allocation7 [shape = 's32[1]{0}', space=sflag, size = 0x4, scoped, tag = 'scoped memory for tpu_custom_call.1']
    #allocation8 [shape = 'u8[6144]{0}', space=vmem, size = 0x1800, scoped, tag = 'input window, operand 1, single buffered']
    #allocation9 [shape = 's32[1]{0}', space=sflag, size = 0x4, scoped, tag = 'scoped memory for tpu_custom_call.1']
    #allocation10 [shape = 'u8[1024]{0}', space=vmem, size = 0x400, scoped, tag = 'output window, operand 0, single buffered']
    %7 = vsyncpa [#allocation6], 0
    %8 = vsyncpa [#allocation9], 0
    %9 = vsyncpa [#allocation7], 0
    // Predicated region
    $region2: #{tpu_custom_call.1} parent=1 // pred_check
      _
    $region3: #{tpu_custom_call.1} parent=1 // pred_check_branch
      %11 = sbr.rel (0) target = $region5
    $region4: #{tpu_custom_call.1} parent=1 // pred_region
      %s13 = ssub.s32 192, 192
      %14 = vsyncadd [#allocation6], %s13
      %s15 = sshll.u32 [#allocation5], 4
      %s16 = int_to_ptr.vmem [resolvable:$true] %s15
      %21 = dma.hbm_to_vmem [thread:$0]  %s0, 192, %s16, [#allocation6], 64, 64, 4
    $region5: #{tpu_custom_call.1} parent=1 // pred_fallthru
      _
    // Predicated region
    $region6: #{tpu_custom_call.1} parent=1 // pred_check
      _
    $region7: #{tpu_custom_call.1} parent=1 // pred_check_branch
      %23 = sbr.rel (0) target = $region9
    $region8: #{tpu_custom_call.1} parent=1 // pred_region
      %s25 = ssub.s32 192, 192
      %26 = vsyncadd [#allocation9], %s25
      %s27 = sshll.u32 [#allocation8], 4
      %s28 = int_to_ptr.vmem [resolvable:$true] %s27
      %33 = dma.hbm_to_vmem [thread:$0]  %s1, 192, %s28, [#allocation9], 64, 64, 4
    $region9: #{tpu_custom_call.1} parent=1 // pred_fallthru
      _
    // Predicated region
    $region10: #{tpu_custom_call.1} parent=1 // pred_check
      _
    $region11: #{tpu_custom_call.1} parent=1 // pred_check_branch
      %35 = sbr.rel (0) target = $region13
    $region12: #{tpu_custom_call.1} parent=1 // pred_region
      %36 = dma.done [#allocation6], 192
    $region13: #{tpu_custom_call.1} parent=1 // pred_fallthru
      _
    // Predicated region
    $region14: #{tpu_custom_call.1} parent=1 // pred_check
      _
    $region15: #{tpu_custom_call.1} parent=1 // pred_check_branch
      %38 = sbr.rel (0) target = $region17
    $region16: #{tpu_custom_call.1} parent=1 // pred_region
      %39 = dma.done [#allocation9], 192
    $region17: #{tpu_custom_call.1} parent=1 // pred_fallthru
      _
    %p40 = scmp.eq.s32.totalorder 0, 0
    // Predicated region
    $region18: #{tpu_custom_call.1} parent=1 // pred_check
      %p41 = pneg %p40
    $region19: #{tpu_custom_call.1} parent=1 // pred_check_branch
      %43 = sbr.rel (%p41) target = $region21
    $region20: #{tpu_custom_call.1} parent=1 // pred_region
      %vm44 = vcmask 1024
      %45 = vst.msk [vmem:[#allocation2] sm:$0x3] %vm44, 0.0
      %46 = vst.msk [vmem:[#allocation2 + $0x2] sm:$0x3] %vm44, 0.0
      %47 = vst.msk [vmem:[#allocation2 + $0x4] sm:$0x3] %vm44, 0.0
      %48 = vst.msk [vmem:[#allocation2 + $0x6] sm:$0x3] %vm44, 0.0
      %49 = vst.msk [vmem:[#allocation2 + $0x8] sm:$0x3] %vm44, 0.0
      %50 = vst.msk [vmem:[#allocation2 + $0xa] sm:$0x3] %vm44, 0.0
      %51 = vst.msk [vmem:[#allocation2 + $0xc] sm:$0x3] %vm44, 0.0
      %52 = vst.msk [vmem:[#allocation2 + $0xe] sm:$0x3] %vm44, 0.0
      %53 = vst.msk [vmem:[#allocation2 + $0x10] sm:$0x3] %vm44, 0.0
      %54 = vst.msk [vmem:[#allocation3] sm:$0x3] %vm44, 0.0
      %55 = vst.msk [vmem:[#allocation3 + $0x2] sm:$0x3] %vm44, 0.0
      %56 = vst.msk [vmem:[#allocation3 + $0x4] sm:$0x3] %vm44, 0.0
      %57 = vst.msk [vmem:[#allocation4] sm:$0x3] %vm44, 0.0
      %58 = vst.msk [vmem:[#allocation4 + $0x2] sm:$0x3] %vm44, 0.0
      %59 = vst.msk [vmem:[#allocation4 + $0x4] sm:$0x3] %vm44, 0.0
    $region21: #{tpu_custom_call.1} parent=1 // pred_fallthru
      _
    %v60 = vld [vmem:[#allocation5] sm:$0xf]
    %s61 = scalar_lea.vmem [#allocation5], 4
    %v62 = vld [vmem:[%s61] sm:$0xf]
    %s63 = scalar_lea.vmem [#allocation5], 8
    %v64 = vld [vmem:[%s63] sm:$0xf]
    %v65 = vld [vmem:[#allocation8] sm:$0xf]
    %s66 = scalar_lea.vmem [#allocation8], 4
    %v67 = vld [vmem:[%s66] sm:$0xf]
    %s68 = scalar_lea.vmem [#allocation8], 8
    %v69 = vld [vmem:[%s68] sm:$0xf]
    %v70 = vld [vmem:[#allocation3] sm:$0x3]
    %v71 = vmul.f32 %v60, %v60
    %v74 = vunpack.c.l.s4 1983009808
    %v75 = vunpack.c.0.s8 %v74
    %v76 = vlaneseq
    %v77 = vshrl.u32 %v76, 7
    %v78 = vsub.s32 %v75, %v77
    %v79 = vrot.slane %v71, %v78
    %v80 = vcombine.high %v79, %v79
    %vm83 = vcmask 1041408
    %v84 = vsel %vm83, %v79, 0.0
    %v85 = vsel %vm83, %v80, 0.0
    %v86 = vadd.f32 %v84, %v85
    %87 = vadd.xlane.f32.xlu0 %v86
    %v88 = vpop.xlane.xlu0 %87
    %v89 = vadd.f32 %v70, %v88
    %vm90 = vcmask 1024
    %91 = vst.msk [vmem:[#allocation3] sm:$0x3] %vm90, %v89
    %s92 = scalar_lea.vmem [#allocation3], 2
    %v93 = vld [vmem:[%s92] sm:$0x3]
    %v94 = vmul.f32 %v62, %v62
    %v97 = vunpack.c.l.s4 1983009808
    %v98 = vunpack.c.0.s8 %v97
    %v99 = vlaneseq
    %v100 = vshrl.u32 %v99, 7
    %v101 = vsub.s32 %v98, %v100
    %v102 = vrot.slane %v94, %v101
    %v103 = vcombine.high %v102, %v102
    %v106 = vsel %vm83, %v102, 0.0
    %v107 = vsel %vm83, %v103, 0.0
    %v108 = vadd.f32 %v106, %v107
    %109 = vadd.xlane.f32.xlu0 %v108
    %v110 = vpop.xlane.xlu0 %109
    %v111 = vadd.f32 %v93, %v110
    %112 = vst.msk [vmem:[%s92] sm:$0x3] %vm90, %v111
    %s113 = scalar_lea.vmem [#allocation3], 4
    %v114 = vld [vmem:[%s113] sm:$0x3]
    %v115 = vmul.f32 %v64, %v64
    %v118 = vunpack.c.l.s4 1983009808
    %v119 = vunpack.c.0.s8 %v118
    %v120 = vlaneseq
    %v121 = vshrl.u32 %v120, 7
    %v122 = vsub.s32 %v119, %v121
    %v123 = vrot.slane %v115, %v122
    %v124 = vcombine.high %v123, %v123
    %v127 = vsel %vm83, %v123, 0.0
    %v128 = vsel %vm83, %v124, 0.0
    %v129 = vadd.f32 %v127, %v128
    %130 = vadd.xlane.f32.xlu0 %v129
    %v131 = vpop.xlane.xlu0 %130
    %v132 = vadd.f32 %v114, %v131
    %133 = vst.msk [vmem:[%s113] sm:$0x3] %vm90, %v132
    %v134 = vld [vmem:[#allocation4] sm:$0x3]
    %v135 = vmul.f32 %v65, %v65
    %v138 = vunpack.c.l.s4 1983009808
    %v139 = vunpack.c.0.s8 %v138
    %v140 = vlaneseq
    %v141 = vshrl.u32 %v140, 7
    %v142 = vsub.s32 %v139, %v141
    %v143 = vrot.slane %v135, %v142
    %v144 = vcombine.high %v143, %v143
    %v147 = vsel %vm83, %v143, 0.0
    %v148 = vsel %vm83, %v144, 0.0
    %v149 = vadd.f32 %v147, %v148
    %150 = vadd.xlane.f32.xlu0 %v149
    %v151 = vpop.xlane.xlu0 %150
    %v152 = vadd.f32 %v134, %v151
    %153 = vst.msk [vmem:[#allocation4] sm:$0x3] %vm90, %v152
    %s154 = scalar_lea.vmem [#allocation4], 2
    %v155 = vld [vmem:[%s154] sm:$0x3]
    %v156 = vmul.f32 %v67, %v67
    %v159 = vunpack.c.l.s4 1983009808
    %v160 = vunpack.c.0.s8 %v159
    %v161 = vlaneseq
    %v162 = vshrl.u32 %v161, 7
    %v163 = vsub.s32 %v160, %v162
    %v164 = vrot.slane %v156, %v163
    %v165 = vcombine.high %v164, %v164
    %v168 = vsel %vm83, %v164, 0.0
    %v169 = vsel %vm83, %v165, 0.0
    %v170 = vadd.f32 %v168, %v169
    %171 = vadd.xlane.f32.xlu0 %v170
    %v172 = vpop.xlane.xlu0 %171
    %v173 = vadd.f32 %v155, %v172
    %174 = vst.msk [vmem:[%s154] sm:$0x3] %vm90, %v173
    %s175 = scalar_lea.vmem [#allocation4], 4
    %v176 = vld [vmem:[%s175] sm:$0x3]
    %v177 = vmul.f32 %v69, %v69
    %v180 = vunpack.c.l.s4 1983009808
    %v181 = vunpack.c.0.s8 %v180
    %v182 = vlaneseq
    %v183 = vshrl.u32 %v182, 7
    %v184 = vsub.s32 %v181, %v183
    %v185 = vrot.slane %v177, %v184
    %v186 = vcombine.high %v185, %v185
    %v189 = vsel %vm83, %v185, 0.0
    %v190 = vsel %vm83, %v186, 0.0
    %v191 = vadd.f32 %v189, %v190
    %192 = vadd.xlane.f32.xlu0 %v191
    %v193 = vpop.xlane.xlu0 %192
    %v194 = vadd.f32 %v176, %v193
    %195 = vst.msk [vmem:[%s175] sm:$0x3] %vm90, %v194
    %v196 = vld [vmem:[#allocation2] sm:$0x3]
    %v197 = vmul.f32 %v60, %v65
    %v200 = vunpack.c.l.s4 1983009808
    %v201 = vunpack.c.0.s8 %v200
    %v202 = vlaneseq
    %v203 = vshrl.u32 %v202, 7
    %v204 = vsub.s32 %v201, %v203
    %v205 = vrot.slane %v197, %v204
    %v206 = vcombine.high %v205, %v205
    %v209 = vsel %vm83, %v205, 0.0
    %v210 = vsel %vm83, %v206, 0.0
    %v211 = vadd.f32 %v209, %v210
    %212 = vadd.xlane.f32.xlu0 %v211
    %v213 = vpop.xlane.xlu0 %212
    %v214 = vadd.f32 %v196, %v213
    %215 = vst.msk [vmem:[#allocation2] sm:$0x3] %vm90, %v214
    %s216 = scalar_lea.vmem [#allocation2], 2
    %v217 = vld [vmem:[%s216] sm:$0x3]
    %v218 = vmul.f32 %v60, %v67
    %v221 = vunpack.c.l.s4 1983009808
    %v222 = vunpack.c.0.s8 %v221
    %v223 = vlaneseq
    %v224 = vshrl.u32 %v223, 7
    %v225 = vsub.s32 %v222, %v224
    %v226 = vrot.slane %v218, %v225
    %v227 = vcombine.high %v226, %v226
    %v230 = vsel %vm83, %v226, 0.0
    %v231 = vsel %vm83, %v227, 0.0
    %v232 = vadd.f32 %v230, %v231
    %233 = vadd.xlane.f32.xlu0 %v232
    %v234 = vpop.xlane.xlu0 %233
    %v235 = vadd.f32 %v217, %v234
    %236 = vst.msk [vmem:[%s216] sm:$0x3] %vm90, %v235
    %s237 = scalar_lea.vmem [#allocation2], 4
    %v238 = vld [vmem:[%s237] sm:$0x3]
    %v239 = vmul.f32 %v60, %v69
    %v242 = vunpack.c.l.s4 1983009808
    %v243 = vunpack.c.0.s8 %v242
    %v244 = vlaneseq
    %v245 = vshrl.u32 %v244, 7
    %v246 = vsub.s32 %v243, %v245
    %v247 = vrot.slane %v239, %v246
    %v248 = vcombine.high %v247, %v247
    %v251 = vsel %vm83, %v247, 0.0
    %v252 = vsel %vm83, %v248, 0.0
    %v253 = vadd.f32 %v251, %v252
    %254 = vadd.xlane.f32.xlu0 %v253
    %v255 = vpop.xlane.xlu0 %254
    %v256 = vadd.f32 %v238, %v255
    %257 = vst.msk [vmem:[%s237] sm:$0x3] %vm90, %v256
    %s258 = scalar_lea.vmem [#allocation2], 6
    %v259 = vld [vmem:[%s258] sm:$0x3]
    %v260 = vmul.f32 %v62, %v65
    %v263 = vunpack.c.l.s4 1983009808
    %v264 = vunpack.c.0.s8 %v263
    %v265 = vlaneseq
    %v266 = vshrl.u32 %v265, 7
    %v267 = vsub.s32 %v264, %v266
    %v268 = vrot.slane %v260, %v267
    %v269 = vcombine.high %v268, %v268
    %v272 = vsel %vm83, %v268, 0.0
    %v273 = vsel %vm83, %v269, 0.0
    %v274 = vadd.f32 %v272, %v273
    %275 = vadd.xlane.f32.xlu0 %v274
    %v276 = vpop.xlane.xlu0 %275
    %v277 = vadd.f32 %v259, %v276
    %278 = vst.msk [vmem:[%s258] sm:$0x3] %vm90, %v277
    %s279 = scalar_lea.vmem [#allocation2], 8
    %v280 = vld [vmem:[%s279] sm:$0x3]
    %v281 = vmul.f32 %v62, %v67
    %v284 = vunpack.c.l.s4 1983009808
    %v285 = vunpack.c.0.s8 %v284
    %v286 = vlaneseq
    %v287 = vshrl.u32 %v286, 7
    %v288 = vsub.s32 %v285, %v287
    %v289 = vrot.slane %v281, %v288
    %v290 = vcombine.high %v289, %v289
    %v293 = vsel %vm83, %v289, 0.0
    %v294 = vsel %vm83, %v290, 0.0
    %v295 = vadd.f32 %v293, %v294
    %296 = vadd.xlane.f32.xlu0 %v295
    %v297 = vpop.xlane.xlu0 %296
    %v298 = vadd.f32 %v280, %v297
    %299 = vst.msk [vmem:[%s279] sm:$0x3] %vm90, %v298
    %s300 = scalar_lea.vmem [#allocation2], 10
    %v301 = vld [vmem:[%s300] sm:$0x3]
    %v302 = vmul.f32 %v62, %v69
    %v305 = vunpack.c.l.s4 1983009808
    %v306 = vunpack.c.0.s8 %v305
    %v307 = vlaneseq
    %v308 = vshrl.u32 %v307, 7
    %v309 = vsub.s32 %v306, %v308
    %v310 = vrot.slane %v302, %v309
    %v311 = vcombine.high %v310, %v310
    %v314 = vsel %vm83, %v310, 0.0
    %v315 = vsel %vm83, %v311, 0.0
    %v316 = vadd.f32 %v314, %v315
    %317 = vadd.xlane.f32.xlu0 %v316
    %v318 = vpop.xlane.xlu0 %317
    %v319 = vadd.f32 %v301, %v318
    %320 = vst.msk [vmem:[%s300] sm:$0x3] %vm90, %v319
    %s321 = scalar_lea.vmem [#allocation2], 12
    %v322 = vld [vmem:[%s321] sm:$0x3]
    %v323 = vmul.f32 %v64, %v65
    %v326 = vunpack.c.l.s4 1983009808
    %v327 = vunpack.c.0.s8 %v326
    %v328 = vlaneseq
    %v329 = vshrl.u32 %v328, 7
    %v330 = vsub.s32 %v327, %v329
    %v331 = vrot.slane %v323, %v330
    %v332 = vcombine.high %v331, %v331
    %v335 = vsel %vm83, %v331, 0.0
    %v336 = vsel %vm83, %v332, 0.0
    %v337 = vadd.f32 %v335, %v336
    %338 = vadd.xlane.f32.xlu0 %v337
    %v339 = vpop.xlane.xlu0 %338
    %v340 = vadd.f32 %v322, %v339
    %341 = vst.msk [vmem:[%s321] sm:$0x3] %vm90, %v340
    %s342 = scalar_lea.vmem [#allocation2], 14
    %v343 = vld [vmem:[%s342] sm:$0x3]
    %v344 = vmul.f32 %v64, %v67
    %v347 = vunpack.c.l.s4 1983009808
    %v348 = vunpack.c.0.s8 %v347
    %v349 = vlaneseq
    %v350 = vshrl.u32 %v349, 7
    %v351 = vsub.s32 %v348, %v350
    %v352 = vrot.slane %v344, %v351
    %v353 = vcombine.high %v352, %v352
    %v356 = vsel %vm83, %v352, 0.0
    %v357 = vsel %vm83, %v353, 0.0
    %v358 = vadd.f32 %v356, %v357
    %359 = vadd.xlane.f32.xlu0 %v358
    %v360 = vpop.xlane.xlu0 %359
    %v361 = vadd.f32 %v343, %v360
    %362 = vst.msk [vmem:[%s342] sm:$0x3] %vm90, %v361
    %s363 = scalar_lea.vmem [#allocation2], 16
    %v364 = vld [vmem:[%s363] sm:$0x3]
    %v365 = vmul.f32 %v64, %v69
    %v368 = vunpack.c.l.s4 1983009808
    %v369 = vunpack.c.0.s8 %v368
    %v370 = vlaneseq
    %v371 = vshrl.u32 %v370, 7
    %v372 = vsub.s32 %v369, %v371
    %v373 = vrot.slane %v365, %v372
    %v374 = vcombine.high %v373, %v373
    %v377 = vsel %vm83, %v373, 0.0
    %v378 = vsel %vm83, %v374, 0.0
    %v379 = vadd.f32 %v377, %v378
    %380 = vadd.xlane.f32.xlu0 %v379
    %v381 = vpop.xlane.xlu0 %380
    %v382 = vadd.f32 %v364, %v381
    %383 = vst.msk [vmem:[%s363] sm:$0x3] %vm90, %v382
    // Predicated region
    $region22: #{tpu_custom_call.1} parent=1 // pred_check
      %p384 = pneg %p40
    $region23: #{tpu_custom_call.1} parent=1 // pred_check_branch
      %386 = sbr.rel (%p384) target = $region25
    $region24: #{tpu_custom_call.1} parent=1 // pred_region
      %v387 = vld [vmem:[#allocation3] sm:$0x3]
      %v388 = vld [vmem:[%s92] sm:$0x3]
      %v389 = vld [vmem:[%s113] sm:$0x3]
      %v390 = vld [vmem:[#allocation4] sm:$0x3]
      %v391 = vld [vmem:[%s154] sm:$0x3]
      %v392 = vld [vmem:[%s175] sm:$0x3]
      %v393 = vadd.f32 %v390, 1e-09
      %v394 = vrcp.pop %v393
      %v395 = vmul.f32 1.0, %v394
      %v396 = vadd.f32 %v391, 1e-09
      %v397 = vrcp.pop %v396
      %v398 = vmul.f32 1.0, %v397
      %v399 = vadd.f32 %v392, 1e-09
      %v400 = vrcp.pop %v399
      %v401 = vmul.f32 1.0, %v400
      %v402 = vld [vmem:[#allocation2] sm:$0x3]
      %v403 = vmul.f32 %v402, %v395
      %v404 = vmul.f32 %v403, %v403
      %v405 = vmul.f32 %v404, %v390
      %v406 = vmul.f32 %v403, 2.0
      %v407 = vmul.f32 %v406, %v402
      %v408 = vsub.f32 %v387, %v407
      %v409 = vadd.f32 %v408, %v405
      %v410 = vmax.f32 %v409, 0.0
      %v411 = vadd.f32 %v410, 1e-09
      %v412 = vrcp.pop %v411
      %v413 = vmul.f32 %v405, %v412
      %v414 = vlog2.pop %v413
      %v415 = vmul.f32 %v414, 0.6931472
      %v416 = vmul.f32 %v415, 4.3429446
      %v417 = vld [vmem:[%s216] sm:$0x3]
      %v418 = vmul.f32 %v417, %v398
      %v419 = vmul.f32 %v418, %v418
      %v420 = vmul.f32 %v419, %v391
      %v421 = vmul.f32 %v418, 2.0
      %v422 = vmul.f32 %v421, %v417
      %v423 = vsub.f32 %v387, %v422
      %v424 = vadd.f32 %v423, %v420
      %v425 = vmax.f32 %v424, 0.0
      %v426 = vadd.f32 %v425, 1e-09
      %v427 = vrcp.pop %v426
      %v428 = vmul.f32 %v420, %v427
      %v429 = vlog2.pop %v428
      %v430 = vmul.f32 %v429, 0.6931472
      %v431 = vmul.f32 %v430, 4.3429446
      %v432 = vld [vmem:[%s237] sm:$0x3]
      %v433 = vmul.f32 %v432, %v401
      %v434 = vmul.f32 %v433, %v433
      %v435 = vmul.f32 %v434, %v392
      %v436 = vmul.f32 %v433, 2.0
      %v437 = vmul.f32 %v436, %v432
      %v438 = vsub.f32 %v387, %v437
      %v439 = vadd.f32 %v438, %v435
      %v440 = vmax.f32 %v439, 0.0
      %v441 = vadd.f32 %v440, 1e-09
      %v442 = vrcp.pop %v441
      %v443 = vmul.f32 %v435, %v442
      %v444 = vlog2.pop %v443
      %v445 = vmul.f32 %v444, 0.6931472
      %v446 = vmul.f32 %v445, 4.3429446
      %v447 = vld [vmem:[%s258] sm:$0x3]
      %v448 = vmul.f32 %v447, %v395
      %v449 = vmul.f32 %v448, %v448
      %v450 = vmul.f32 %v449, %v390
      %v451 = vmul.f32 %v448, 2.0
      %v452 = vmul.f32 %v451, %v447
      %v453 = vsub.f32 %v388, %v452
      %v454 = vadd.f32 %v453, %v450
      %v455 = vmax.f32 %v454, 0.0
      %v456 = vadd.f32 %v455, 1e-09
      %v457 = vrcp.pop %v456
      %v458 = vmul.f32 %v450, %v457
      %v459 = vlog2.pop %v458
      %v460 = vmul.f32 %v459, 0.6931472
      %v461 = vmul.f32 %v460, 4.3429446
      %v462 = vld [vmem:[%s279] sm:$0x3]
      %v463 = vmul.f32 %v462, %v398
      %v464 = vmul.f32 %v463, %v463
      %v465 = vmul.f32 %v464, %v391
      %v466 = vmul.f32 %v463, 2.0
      %v467 = vmul.f32 %v466, %v462
      %v468 = vsub.f32 %v388, %v467
      %v469 = vadd.f32 %v468, %v465
      %v470 = vmax.f32 %v469, 0.0
      %v471 = vadd.f32 %v470, 1e-09
      %v472 = vrcp.pop %v471
      %v473 = vmul.f32 %v465, %v472
      %v474 = vlog2.pop %v473
      %v475 = vmul.f32 %v474, 0.6931472
      %v476 = vmul.f32 %v475, 4.3429446
      %v477 = vld [vmem:[%s300] sm:$0x3]
      %v478 = vmul.f32 %v477, %v401
      %v479 = vmul.f32 %v478, %v478
      %v480 = vmul.f32 %v479, %v392
      %v481 = vmul.f32 %v478, 2.0
      %v482 = vmul.f32 %v481, %v477
      %v483 = vsub.f32 %v388, %v482
      %v484 = vadd.f32 %v483, %v480
      %v485 = vmax.f32 %v484, 0.0
      %v486 = vadd.f32 %v485, 1e-09
      %v487 = vrcp.pop %v486
      %v488 = vmul.f32 %v480, %v487
      %v489 = vlog2.pop %v488
      %v490 = vmul.f32 %v489, 0.6931472
      %v491 = vmul.f32 %v490, 4.3429446
      %v492 = vld [vmem:[%s321] sm:$0x3]
      %v493 = vmul.f32 %v492, %v395
      %v494 = vmul.f32 %v493, %v493
      %v495 = vmul.f32 %v494, %v390
      %v496 = vmul.f32 %v493, 2.0
      %v497 = vmul.f32 %v496, %v492
      %v498 = vsub.f32 %v389, %v497
      %v499 = vadd.f32 %v498, %v495
      %v500 = vmax.f32 %v499, 0.0
      %v501 = vadd.f32 %v500, 1e-09
      %v502 = vrcp.pop %v501
      %v503 = vmul.f32 %v495, %v502
      %v504 = vlog2.pop %v503
      %v505 = vmul.f32 %v504, 0.6931472
      %v506 = vmul.f32 %v505, 4.3429446
      %v507 = vld [vmem:[%s342] sm:$0x3]
      %v508 = vmul.f32 %v507, %v398
      %v509 = vmul.f32 %v508, %v508
      %v510 = vmul.f32 %v509, %v391
      %v511 = vmul.f32 %v508, 2.0
      %v512 = vmul.f32 %v511, %v507
      %v513 = vsub.f32 %v389, %v512
      %v514 = vadd.f32 %v513, %v510
      %v515 = vmax.f32 %v514, 0.0
      %v516 = vadd.f32 %v515, 1e-09
      %v517 = vrcp.pop %v516
      %v518 = vmul.f32 %v510, %v517
      %v519 = vlog2.pop %v518
      %v520 = vmul.f32 %v519, 0.6931472
      %v521 = vmul.f32 %v520, 4.3429446
      %v522 = vld [vmem:[%s363] sm:$0x3]
      %v523 = vmul.f32 %v522, %v401
      %v524 = vmul.f32 %v523, %v523
      %v525 = vmul.f32 %v524, %v392
      %v526 = vmul.f32 %v523, 2.0
      %v527 = vmul.f32 %v526, %v522
      %v528 = vsub.f32 %v389, %v527
      %v529 = vadd.f32 %v528, %v525
      %v530 = vmax.f32 %v529, 0.0
      %v531 = vadd.f32 %v530, 1e-09
      %v532 = vrcp.pop %v531
      %v533 = vmul.f32 %v525, %v532
      %v534 = vlog2.pop %v533
      %v535 = vmul.f32 %v534, 0.6931472
      %v536 = vmul.f32 %v535, 4.3429446
      %v537 = vadd.f32 %v416, 0.0
      %v538 = vadd.f32 %v537, %v476
      %v539 = vadd.f32 %v538, %v536
      %v540 = vmul.f32 %v539, 0.33333334
      %v541 = vadd.f32 %v537, %v521
      %v542 = vadd.f32 %v541, %v491
      %v543 = vmul.f32 %v542, 0.33333334
      %v544 = vadd.f32 %v461, 0.0
      %v545 = vadd.f32 %v544, %v431
      %v546 = vadd.f32 %v545, %v536
      %v547 = vmul.f32 %v546, 0.33333334
      %v548 = vadd.f32 %v544, %v521
      %v549 = vadd.f32 %v548, %v446
      %v550 = vmul.f32 %v549, 0.33333334
      %v551 = vadd.f32 %v506, 0.0
      %v552 = vadd.f32 %v551, %v431
      %v553 = vadd.f32 %v552, %v491
      %v554 = vmul.f32 %v553, 0.33333334
      %v555 = vadd.f32 %v551, %v476
      %v556 = vadd.f32 %v555, %v446
      %v557 = vmul.f32 %v556, 0.33333334
      %559 = vrot.lane.b32.xlu0 %v543, 1
      %v560 = vpop.permute.xlu0 %559
      %563 = vrot.lane.b32.xlu0 %v547, 2
      %v564 = vpop.permute.xlu0 %563
      %567 = vrot.lane.b32.xlu0 %v550, 3
      %v568 = vpop.permute.xlu0 %567
      %571 = vrot.lane.b32.xlu0 %v554, 4
      %v572 = vpop.permute.xlu0 %571
      %575 = vrot.lane.b32.xlu0 %v557, 5
      %v576 = vpop.permute.xlu0 %575
      %vm578 = vcmask 7168
      %v579 = vsel %vm578, %v540, %v560
      %vm580 = vcmask 15360
      %v581 = vsel %vm580, %v579, %v564
      %vm582 = vcmask 23552
      %v583 = vsel %vm582, %v581, %v568
      %vm584 = vcmask 31744
      %v585 = vsel %vm584, %v583, %v572
      %vm586 = vcmask 39936
      %v587 = vsel %vm586, %v585, %v576
      %vm588 = vcmask 41984
      %589 = vst.msk [vmem:[#allocation10] sm:$0x3] %vm588, %v587
    $region25: #{tpu_custom_call.1} parent=1 // pred_fallthru
      _
    // Predicated region
    $region26: #{tpu_custom_call.1} parent=1 // pred_check
      _
    $region27: #{tpu_custom_call.1} parent=1 // pred_check_branch
      %591 = sbr.rel (0) target = $region29
    $region28: #{tpu_custom_call.1} parent=1 // pred_region
      %s593 = ssub.s32 32, 32
      %594 = vsyncadd [#allocation7], %s593
      %s596 = sshll.u32 [#allocation10], 4
      %s597 = int_to_ptr.vmem [resolvable:$true] %s596
      %599 = dma.vmem_to_hbm [thread:$0]  %s597, 32, %s2, [#allocation7]
    $region29: #{tpu_custom_call.1} parent=1 // pred_fallthru
      _
    // Predicated region
    $region30: #{tpu_custom_call.1} parent=1 // pred_check
      _
    $region31: #{tpu_custom_call.1} parent=1 // pred_check_branch
      %601 = sbr.rel (0) target = $region33
    $region32: #{tpu_custom_call.1} parent=1 // pred_region
      %602 = dma.done [#allocation7], 32
    $region33: #{tpu_custom_call.1} parent=1 // pred_fallthru
      _
    %603 = vsyncpa [#allocation6], 1
    %604 = vsyncpa [#allocation9], 1
    %605 = vsyncpa [#allocation7], 1

</llo_original>
